<compile_context>
chip_gen: v6e
topology: v6e:2x2x1
jax: 0.10.0
libtpu: 0.0.40
codegen_flags: <defaults>
</compile_context>

<pallas_src>
import math
from functools import partial

import jax
import jax.numpy as jnp
from jax.experimental import pallas as pl
from jax.experimental.pallas import tpu as pltpu

EPS = 1e-5  # nn.LayerNorm default
BF16 = jnp.bfloat16
VMEM_LIMIT = 64 * 1024 * 1024  # explicit scoped-VMEM budget (weights stream on v7x)


def _ln(x, g, b):
    # LayerNorm statistics kept in f32.
    mu = jnp.mean(x, axis=-1, keepdims=True)
    var = jnp.mean(jnp.square(x - mu), axis=-1, keepdims=True)
    return (x - mu) * jax.lax.rsqrt(var + EPS) * g + b


# --------------------------------------------------------------------------
# conv1 (patch embedding, bias=False) as a tiled matmul kernel
# --------------------------------------------------------------------------
def _patch_embed_kernel(p_ref, w_ref, o_ref):
    o_ref[...] = jnp.dot(p_ref[...], w_ref[...],
                         preferred_element_type=jnp.float32)


def patch_embed(patches, w):
    M, K = patches.shape
    D = w.shape[1]
    tm = 128 if M % 128 == 0 else M        # tile patch rows when possible
    return pl.pallas_call(
        _patch_embed_kernel,
        out_shape=jax.ShapeDtypeStruct((M, D), jnp.float32),
        grid=(M // tm,),
        in_specs=[pl.BlockSpec((tm, K), lambda i: (i, 0)),
                  pl.BlockSpec((K, D), lambda i: (0, 0))],
        out_specs=pl.BlockSpec((tm, D), lambda i: (i, 0)),
        compiler_params=pltpu.CompilerParams(
            dimension_semantics=("parallel",)),
    )(patches, w)


# --------------------------------------------------------------------------
# CLS token prepend + positional embedding + ln_pre, padded to Sp = ceil8(S)
# (single full-tile store; padded rows are zero and masked in attention)
# --------------------------------------------------------------------------
def _pre_kernel(tok_ref, cls_ref, pos_ref, g_ref, b_ref, o_ref):
    tok = tok_ref[...]                                   # [B, N, D]
    B, N, D = tok.shape
    S = N + 1
    Sp = o_ref.shape[1]
    cls = jnp.broadcast_to(cls_ref[...][None, :, :], (B, 1, D))
    x = jnp.concatenate([cls, tok], axis=1) + pos_ref[...][None, :, :]
    x = _ln(x, g_ref[...], b_ref[...])
    if Sp > S:                                           # static pad to mult-of-8
        x = jnp.concatenate([x, jnp.zeros((B, Sp - S, D), x.dtype)], axis=1)
    o_ref[...] = x                                       # one unmasked store


def embed_pre(tokens, cls_emb, pos_emb, g, b):
    B, N, D = tokens.shape
    S = N + 1
    Sp = ((S + 7) // 8) * 8
    return pl.pallas_call(
        _pre_kernel,
        out_shape=jax.ShapeDtypeStruct((B, Sp, D), jnp.float32),
        grid=(1,),
        in_specs=[pl.BlockSpec((B, N, D), lambda i: (0, 0, 0)),
                  pl.BlockSpec((1, D), lambda i: (0, 0)),
                  pl.BlockSpec((S, D), lambda i: (0, 0)),
                  pl.BlockSpec((1, D), lambda i: (0, 0)),
                  pl.BlockSpec((1, D), lambda i: (0, 0))],
        out_specs=pl.BlockSpec((B, Sp, D), lambda i: (0, 0, 0)),
    )(tokens, cls_emb, pos_emb, g, b)


# --------------------------------------------------------------------------
# Attention half of a ResidualAttentionBlock:  x += MHA(ln_1(x))
# batched-head einsums, bf16 matmul operands, f32 accumulation
# --------------------------------------------------------------------------
def _attn_kernel(x_ref, ln1g_ref, ln1b_ref, wqkv_ref, bqkv_ref, wo3_ref,
                 bo_ref, o_ref, *, num_heads, seq_len):
    x = x_ref[0]                                         # [Sp, D] f32
    Sp, D = x.shape
    Dh = D // num_heads
    scale = 1.0 / math.sqrt(Dh)

    h = _ln(x, ln1g_ref[...], ln1b_ref[...])
    qkv = jnp.dot(h.astype(BF16), wqkv_ref[...],
                  preferred_element_type=jnp.float32) + bqkv_ref[...]  # [Sp,3D]

    def split_heads(z):                                  # [Sp, D] -> [H, Sp, Dh]
        return z.reshape(Sp, num_heads, Dh).transpose(1, 0, 2)

    q = split_heads(qkv[:, 0:D] * scale)
    k = split_heads(qkv[:, D:2 * D])
    v = split_heads(qkv[:, 2 * D:3 * D])

    # batched scores for all heads at once
    s = jnp.einsum('hqd,hkd->hqk', q.astype(BF16), k.astype(BF16),
                   preferred_element_type=jnp.float32)   # [H, Sp, Sp]
    # mask padded key rows (Sp >= seq_len)
    kidx = jax.lax.broadcasted_iota(jnp.int32, (1, 1, Sp), 2)
    s = jnp.where(kidx < seq_len, s, -1e30)

    s = s - jnp.max(s, axis=-1, keepdims=True)
    p = jnp.exp(s)
    p = p * pl.reciprocal(jnp.sum(p, axis=-1, keepdims=True), approx=True)

    o = jnp.einsum('hqk,hkd->hqd', p.astype(BF16), v.astype(BF16),
                   preferred_element_type=jnp.float32)   # [H, Sp, Dh]
    # output projection folded per head ([H, Dh, D]) and accumulated over heads
    proj = jnp.einsum('hqd,hde->hqe', o.astype(BF16), wo3_ref[...],
                      preferred_element_type=jnp.float32)  # [H, Sp, D]
    attn = jnp.sum(proj, axis=0) + bo_ref[...]
    o_ref[0] = x + attn


def attention_block(x, p, *, num_heads, seq_len):
    B, Sp, D = x.shape
    weights = [p["ln1_g"], p["ln1_b"], p["w_qkv"], p["b_qkv"],
               p["w_out3"], p["b_out"]]

    def wspec(a):
        nd = a.ndim
        return pl.BlockSpec(a.shape, lambda b, _nd=nd: (0,) * _nd)

    # TODO(synk): for v7x with tiny B, add a second parallel (query-tile) grid
    # axis so both TensorCores have work.
    return pl.pallas_call(
        partial(_attn_kernel, num_heads=num_heads, seq_len=seq_len),
        out_shape=jax.ShapeDtypeStruct((B, Sp, D), jnp.float32),
        grid=(B,),
        in_specs=[pl.BlockSpec((1, Sp, D), lambda b: (b, 0, 0))]
                 + [wspec(w) for w in weights],
        out_specs=pl.BlockSpec((1, Sp, D), lambda b: (b, 0, 0)),
        compiler_params=pltpu.CompilerParams(
            dimension_semantics=("parallel",),
            vmem_limit_bytes=VMEM_LIMIT),
    )(x, *weights)


# --------------------------------------------------------------------------
# MLP half of a ResidualAttentionBlock:  x += MLP_QuickGELU(ln_2(x))
# fc1/fc2 weights streamed in chunks over the 4D hidden dim ("arbitrary"
# reduction axis) so VMEM stays bounded for realistic widths on v7x.
# --------------------------------------------------------------------------
def _mlp_kernel(x_ref, ln2g_ref, ln2b_ref, w1_ref, b1_ref, w2_ref, b2_ref,
                o_ref, h2_scr, acc_scr):
    c = pl.program_id(1)
    x = x_ref[0]                                         # [Sp, D] f32

    @pl.when(c == 0)
    def _():
        # LayerNorm computed once per token block, cached as bf16
        h2_scr[...] = _ln(x, ln2g_ref[...], ln2b_ref[...]).astype(BF16)
        acc_scr[...] = jnp.zeros_like(acc_scr)

    m = jnp.dot(h2_scr[...], w1_ref[...],
                preferred_element_type=jnp.float32) + b1_ref[...]
    m = m * jax.nn.sigmoid(1.702 * m)                    # QuickGELU
    acc_scr[...] += jnp.dot(m.astype(BF16), w2_ref[...],
                            preferred_element_type=jnp.float32)

    @pl.when(c == pl.num_programs(1) - 1)
    def _():
        o_ref[0] = x + acc_scr[...] + b2_ref[...]


def mlp_block(x, p, *, ffn_chunk):
    B, Sp, D = x.shape
    hidden = p["w_fc1"].shape[1]
    tc = min(ffn_chunk, hidden)
    assert hidden % tc == 0
    nc = hidden // tc
    return pl.pallas_call(
        _mlp_kernel,
        out_shape=jax.ShapeDtypeStruct((B, Sp, D), jnp.float32),
        grid=(B, nc),
        in_specs=[
            pl.BlockSpec((1, Sp, D), lambda b, c: (b, 0, 0)),
            pl.BlockSpec((1, D), lambda b, c: (0, 0)),
            pl.BlockSpec((1, D), lambda b, c: (0, 0)),
            pl.BlockSpec((D, tc), lambda b, c: (0, c)),   # w_fc1 column chunk
            pl.BlockSpec((1, tc), lambda b, c: (0, c)),   # b_fc1 chunk
            pl.BlockSpec((tc, D), lambda b, c: (c, 0)),   # w_fc2 row chunk
            pl.BlockSpec((1, D), lambda b, c: (0, 0)),
        ],
        out_specs=pl.BlockSpec((1, Sp, D), lambda b, c: (b, 0, 0)),
        scratch_shapes=[pltpu.VMEM((Sp, D), BF16),        # cached ln_2(x)
                        pltpu.VMEM((Sp, D), jnp.float32)],  # fc2 accumulator
        compiler_params=pltpu.CompilerParams(
            dimension_semantics=("parallel", "arbitrary"),
            vmem_limit_bytes=VMEM_LIMIT),
    )(x, p["ln2_g"], p["ln2_b"], p["w_fc1"], p["b_fc1"],
      p["w_fc2"], p["b_fc2"])


# --------------------------------------------------------------------------
# ln_post on CLS token + output projection (fetch only the first 8 rows)
# --------------------------------------------------------------------------
def _head_kernel(x_ref, g_ref, b_ref, proj_ref, o_ref):
    cls = x_ref[...][:, 0, :]                            # [B, D] (row 0 = CLS)
    cls = _ln(cls, g_ref[...], b_ref[...])
    o_ref[...] = jnp.dot(cls.astype(BF16), proj_ref[...],
                         preferred_element_type=jnp.float32)


def head(x, g, b, proj):
    B, Sp, D = x.shape
    out_dim = proj.shape[1]
    # Only the first sublane group (8 rows) of each batch is DMA'd; row 0 is CLS.
    return pl.pallas_call(
        _head_kernel,
        out_shape=jax.ShapeDtypeStruct((B, out_dim), jnp.float32),
        grid=(1,),
        in_specs=[pl.BlockSpec((B, 8, D), lambda i: (0, 0, 0)),
                  pl.BlockSpec((1, D), lambda i: (0, 0)),
                  pl.BlockSpec((1, D), lambda i: (0, 0)),
                  pl.BlockSpec((D, out_dim), lambda i: (0, 0))],
        out_specs=pl.BlockSpec((B, out_dim), lambda i: (0, 0)),
    )(x, g, b, proj)


# --------------------------------------------------------------------------
# Full encode_image forward
# --------------------------------------------------------------------------
def image_encoder(images, params, *, patch_size, num_heads, ffn_chunk=256):
    B, C, H, W = images.shape
    P = patch_size
    Hg, Wg = H // P, W // P
    S = Hg * Wg + 1
    # conv(stride=P) == unfold into patch rows, flattened in (c, i, j) order.
    patches = images.reshape(B, C, Hg, P, Wg, P) \
                    .transpose(0, 2, 4, 1, 3, 5) \
                    .reshape(B * Hg * Wg, C * P * P)
    D = params["w_patch"].shape[1]
    tok = patch_embed(patches.astype(BF16),
                      params["w_patch"]).reshape(B, Hg * Wg, D)
    x = embed_pre(tok, params["cls_emb"], params["pos_emb"],
                  params["ln_pre_g"], params["ln_pre_b"])
    for blk in params["blocks"]:
        x = attention_block(x, blk, num_heads=num_heads, seq_len=S)
        x = mlp_block(x, blk, ffn_chunk=ffn_chunk)
    return head(x, params["ln_post_g"], params["ln_post_b"], params["proj"])


# --------------------------------------------------------------------------
# Deterministic synthetic parameters (matmul weights stored in bf16)
# --------------------------------------------------------------------------
def init_params(key, *, C, P, D, S, num_layers, num_heads, out_dim):
    Dh = D // num_heads
    ks = iter(jax.random.split(key, 8 + 6 * num_layers))

    def nrm(k, shape, scale=0.02, dtype=jnp.float32):
        return (scale * jax.random.normal(k, shape, dtype=jnp.float32)).astype(dtype)

    params = {
        "w_patch": nrm(next(ks), (C * P * P, D), dtype=BF16),  # conv1 weight, flat
        "cls_emb": nrm(next(ks), (1, D)),
        "pos_emb": nrm(next(ks), (S, D)),
        "ln_pre_g": jnp.ones((1, D), jnp.float32),
        "ln_pre_b": jnp.zeros((1, D), jnp.float32),
        "ln_post_g": jnp.ones((1, D), jnp.float32),
        "ln_post_b": jnp.zeros((1, D), jnp.float32),
        "proj": nrm(next(ks), (D, out_dim), dtype=BF16),
        "blocks": [],
    }
    for _ in range(num_layers):
        params["blocks"].append({
            "ln1_g": jnp.ones((1, D), jnp.float32),
            "ln1_b": jnp.zeros((1, D), jnp.float32),
            # stored as [in, out] (PyTorch Linear weight transposed)
            "w_qkv": nrm(next(ks), (D, 3 * D), dtype=BF16),
            "b_qkv": jnp.zeros((1, 3 * D), jnp.float32),
            # out-projection pre-reshaped to [H, Dh, D] for per-head folding
            "w_out3": nrm(next(ks), (num_heads, Dh, D), dtype=BF16),
            "b_out": jnp.zeros((1, D), jnp.float32),
            "ln2_g": jnp.ones((1, D), jnp.float32),
            "ln2_b": jnp.zeros((1, D), jnp.float32),
            "w_fc1": nrm(next(ks), (D, 4 * D), dtype=BF16),
            "b_fc1": jnp.zeros((1, 4 * D), jnp.float32),
            "w_fc2": nrm(next(ks), (4 * D, D), dtype=BF16),
            "b_fc2": jnp.zeros((1, D), jnp.float32),
        })
    return params


if __name__ == "__main__":
    # small CLIP-ViT-like config with lane/sublane-friendly dims
    B, C, HW = 2, 3, 32
    P = 8                      # patch size -> 4x4 = 16 patches
    D = 128                    # transformer width (lane-aligned)
    NUM_HEADS = 2
    NUM_LAYERS = 2
    OUT_DIM = 128              # embedding projection dim (lane-aligned)
    S = (HW // P) ** 2 + 1     # 16 patches + CLS = 17 (padded to 24 in-kernel)

    key = jax.random.PRNGKey(0)
    k_img, k_par = jax.random.split(key)
    images = jax.random.normal(k_img, (B, C, HW, HW), dtype=jnp.float32)  # NCHW
    params = init_params(k_par, C=C, P=P, D=D, S=S, num_layers=NUM_LAYERS,
                         num_heads=NUM_HEADS, out_dim=OUT_DIM)

    out = image_encoder(images, params, patch_size=P, num_heads=NUM_HEADS)
    out = jax.block_until_ready(out)
    assert out.shape == (B, OUT_DIM) and out.dtype == jnp.float32
    assert bool(jnp.all(jnp.isfinite(out)))
    print("KERNEL_OK")
</pallas_src>

<mosaic_0001>
module attributes {stable_mosaic.version = 11 : i64} {
  func.func @_patch_embed_kernel(%arg0: i32, %arg1: memref<32x192xbf16, #tpu.memory_space<vmem>>, %arg2: memref<192x128xbf16, #tpu.memory_space<vmem>>, %arg3: memref<32x128xf32, #tpu.memory_space<vmem>>) attributes {dimension_semantics = [#tpu.dimension_semantics<parallel>], iteration_bounds = array<i64: 1>, scalar_prefetch = 0 : i64, scratch_operands = 0 : i64, tpu.core_type = #tpu.core_type<tc>, window_params = [{transform_indices = @transform_0, window_bounds = array<i64: 32, 192>}, {pipeline_mode = #tpu.pipeline_mode<synchronous>, transform_indices = @transform_1, window_bounds = array<i64: 192, 128>}, {transform_indices = @transform_2, window_bounds = array<i64: 32, 128>}]} {
    %c0 = arith.constant 0 : index
    %c0_0 = arith.constant 0 : index
    %0 = vector.load %arg1[%c0, %c0_0] : memref<32x192xbf16, #tpu.memory_space<vmem>>, vector<32x192xbf16>
    %c0_1 = arith.constant 0 : index
    %c0_2 = arith.constant 0 : index
    %1 = vector.load %arg2[%c0_1, %c0_2] : memref<192x128xbf16, #tpu.memory_space<vmem>>, vector<192x128xbf16>
    %cst = arith.constant dense<0.000000e+00> : vector<32x128xf32>
    %2 = tpu.matmul %0, %1, %cst {dimension_numbers = #tpu.dot_dimension_numbers<[1], [0], [0], [1], [0, 0, 1, 1], [], []>} : vector<32x192xbf16>, vector<192x128xbf16>, vector<32x128xf32> -> vector<32x128xf32>
    %c0_3 = arith.constant 0 : index
    %c0_4 = arith.constant 0 : index
    %3 = vector.load %arg3[%c0_3, %c0_4] : memref<32x128xf32, #tpu.memory_space<vmem>>, vector<32x128xf32>
    tpu.vector_store %arg3[%c0_3, %c0_4], %2 {strides = array<i32>} : memref<32x128xf32, #tpu.memory_space<vmem>>, vector<32x128xf32>,
    return
  }
  func.func @transform_0(%arg0: i32) -> (i32, i32) {
    %c0_i32 = arith.constant 0 : i32
    %c0_i32_0 = arith.constant 0 : i32
    return %arg0, %c0_i32 : i32, i32
  }
  func.func @transform_1(%arg0: i32) -> (i32, i32) {
    %c0_i32 = arith.constant 0 : i32
    %c0_i32_0 = arith.constant 0 : i32
    %c0_i32_1 = arith.constant 0 : i32
    return %c0_i32, %c0_i32_0 : i32, i32
  }
  func.func @transform_2(%arg0: i32) -> (i32, i32) {
    %c0_i32 = arith.constant 0 : i32
    %c0_i32_0 = arith.constant 0 : i32
    return %arg0, %c0_i32 : i32, i32
  }
}

</mosaic_0001>

<llo_original>
// kernel: tpu_custom_call.1
$region0: #{tpu_custom_call.1}
  #allocation0 [shape = 'u32[]', space=smem, size = 0x4, offset = 0x4, fixed_abs, tag = 'smem constant byte address 0x4 - core index']
  #allocation1 [shape = 'u32[144,128]{1,0:T(1,128)}', space=vmem, size = 0x12000, scoped, tag = 'internal scratch']
  %s0 = inlined_call_operand.hbm [shape: bf16[32,192], index: 0, kind: input, shape index: {}]
  %s1 = inlined_call_operand.hbm [shape: bf16[192,128], index: 1, kind: input, shape index: {}]
  %s2 = inlined_call_operand.hbm [shape: f32[32,128], index: 2, kind: output, shape index: {}]
  %s3 = sld [smem:[#allocation0]]
  $region26: #{tpu_custom_call.1} parent=0
    _
  %s5 = ssub.s32 1, %s3
  %s6 = scalar_select 0, %s5, %s3
  $region1: #{tpu_custom_call.1} parent=0
    #allocation2 [shape = 'u8[16384]{0}', space=vmem, size = 0x4000, scoped, tag = 'input window, operand 0, single buffered']
    #allocation3 [shape = 's32[1]{0}', space=sflag, size = 0x4, scoped, tag = 'scoped memory for tpu_custom_call.1']
    #allocation4 [shape = 's32[1]{0}', space=sflag, size = 0x4, scoped, tag = 'scoped memory for tpu_custom_call.1']
    #allocation5 [shape = 'u8[49152]{0}', space=vmem, size = 0xc000, scoped, tag = 'input window, operand 1, single buffered']
    #allocation6 [shape = 's32[1]{0}', space=sflag, size = 0x4, scoped, tag = 'scoped memory for tpu_custom_call.1']
    #allocation7 [shape = 'u8[16384]{0}', space=vmem, size = 0x4000, scoped, tag = 'output window, operand 0, single buffered']
    %7 = vsyncpa [#allocation3], 0
    %8 = vsyncpa [#allocation6], 0
    %9 = vsyncpa [#allocation4], 0
    // Predicated region
    $region2: #{tpu_custom_call.1} parent=1 // pred_check
      _
    $region3: #{tpu_custom_call.1} parent=1 // pred_check_branch
      %11 = sbr.rel (0) target = $region5
    $region4: #{tpu_custom_call.1} parent=1 // pred_region
      %s13 = ssub.s32 512, 512
      %14 = vsyncadd [#allocation3], %s13
      %s15 = sshll.u32 [#allocation2], 4
      %s16 = int_to_ptr.vmem [resolvable:$true] %s15
      %21 = dma.hbm_to_vmem [thread:$0]  %s0, 512, %s16, [#allocation3], 128, 128, 8
    $region5: #{tpu_custom_call.1} parent=1 // pred_fallthru
      _
    // Predicated region
    $region6: #{tpu_custom_call.1} parent=1 // pred_check
      _
    $region7: #{tpu_custom_call.1} parent=1 // pred_check_branch
      %23 = sbr.rel (0) target = $region9
    $region8: #{tpu_custom_call.1} parent=1 // pred_region
      %s25 = ssub.s32 1536, 1536
      %26 = vsyncadd [#allocation6], %s25
      %s27 = sshll.u32 [#allocation5], 4
      %s28 = int_to_ptr.vmem [resolvable:$true] %s27
      %33 = dma.hbm_to_vmem [thread:$0]  %s1, 1536, %s28, [#allocation6], 64, 64, 4
    $region9: #{tpu_custom_call.1} parent=1 // pred_fallthru
      _
    // Predicated region
    $region10: #{tpu_custom_call.1} parent=1 // pred_check
      _
    $region11: #{tpu_custom_call.1} parent=1 // pred_check_branch
      %35 = sbr.rel (0) target = $region13
    $region12: #{tpu_custom_call.1} parent=1 // pred_region
      %36 = dma.done [#allocation3], 512
    $region13: #{tpu_custom_call.1} parent=1 // pred_fallthru
      _
    // Predicated region
    $region14: #{tpu_custom_call.1} parent=1 // pred_check
      _
    $region15: #{tpu_custom_call.1} parent=1 // pred_check_branch
      %38 = sbr.rel (0) target = $region17
    $region16: #{tpu_custom_call.1} parent=1 // pred_region
      %39 = dma.done [#allocation6], 1536
    $region17: #{tpu_custom_call.1} parent=1 // pred_fallthru
      _
    %v41 = vld [vmem:[#allocation2] sm:$0xff]
    %v42 = vld [vmem:[#allocation2 + $0x8] sm:$0xff]
    %v43 = vld [vmem:[#allocation2 + $0x10] sm:$0xff]
    %v44 = vld [vmem:[#allocation2 + $0x18] sm:$0xff]
    %v45 = vld [vmem:[#allocation5] sm:$0xf]
    %v46 = vld [vmem:[#allocation5 + $0x4] sm:$0xf]
    %v47 = vld [vmem:[#allocation5 + $0x8] sm:$0xf]
    %v48 = vld [vmem:[#allocation5 + $0xc] sm:$0xf]
    %v49 = vld [vmem:[#allocation5 + $0x10] sm:$0xf]
    %v50 = vld [vmem:[#allocation5 + $0x14] sm:$0xf]
    %v51 = vld [vmem:[#allocation5 + $0x18] sm:$0xf]
    %v52 = vld [vmem:[#allocation5 + $0x1c] sm:$0xf]
    %v53 = vld [vmem:[#allocation5 + $0x20] sm:$0xf]
    %v54 = vld [vmem:[#allocation5 + $0x24] sm:$0xf]
    %v55 = vld [vmem:[#allocation5 + $0x28] sm:$0xf]
    %v56 = vld [vmem:[#allocation5 + $0x2c] sm:$0xf]
    %v57 = vld [vmem:[#allocation5 + $0x30] sm:$0xf]
    %v58 = vld [vmem:[#allocation5 + $0x34] sm:$0xf]
    %v59 = vld [vmem:[#allocation5 + $0x38] sm:$0xf]
    %v60 = vld [vmem:[#allocation5 + $0x3c] sm:$0xf]
    %v61 = vld [vmem:[#allocation5 + $0x40] sm:$0xf]
    %v62 = vld [vmem:[#allocation5 + $0x44] sm:$0xf]
    %v63 = vld [vmem:[#allocation5 + $0x48] sm:$0xf]
    %v64 = vld [vmem:[#allocation5 + $0x4c] sm:$0xf]
    %v65 = vld [vmem:[#allocation5 + $0x50] sm:$0xf]
    %v66 = vld [vmem:[#allocation5 + $0x54] sm:$0xf]
    %v67 = vld [vmem:[#allocation5 + $0x58] sm:$0xf]
    %v68 = vld [vmem:[#allocation5 + $0x5c] sm:$0xf]
    %v73 = vunpack.c.l.b16 %v41
    %v74 = vunpack.c.h.b16 %v41
    %v75 = vunpack.c.l.b16 %v42
    %v76 = vunpack.c.h.b16 %v42
    %v77 = vunpack.c.l.b16 %v43
    %v78 = vunpack.c.h.b16 %v43
    %v79 = vunpack.c.l.b16 %v44
    %v80 = vunpack.c.h.b16 %v44
    %v81 = vpack.c.b16 %v75, %v73
    %v82 = vpack.c.b16 %v76, %v74
    %v83 = vpack.c.b16 %v79, %v77
    %v84 = vpack.c.b16 %v80, %v78
    %v111 = vunpack.c.l.b16 %v45
    %v112 = vunpack.c.l.b16 %v46
    %v113 = vunpack.c.l.b16 %v47
    %v114 = vunpack.c.l.b16 %v48
    %v115 = vunpack.c.l.b16 %v49
    %v116 = vunpack.c.l.b16 %v50
    %v117 = vunpack.c.l.b16 %v51
    %v118 = vunpack.c.l.b16 %v52
    %v119 = vunpack.c.l.b16 %v53
    %v120 = vunpack.c.l.b16 %v54
    %v121 = vunpack.c.l.b16 %v55
    %v122 = vunpack.c.l.b16 %v56
    %v123 = vunpack.c.l.b16 %v57
    %v124 = vunpack.c.l.b16 %v58
    %v125 = vunpack.c.l.b16 %v59
    %v126 = vunpack.c.l.b16 %v60
    %v127 = vunpack.c.l.b16 %v61
    %v128 = vunpack.c.l.b16 %v62
    %v129 = vunpack.c.l.b16 %v63
    %v130 = vunpack.c.l.b16 %v64
    %v131 = vunpack.c.l.b16 %v65
    %v132 = vunpack.c.l.b16 %v66
    %v133 = vunpack.c.l.b16 %v67
    %v134 = vunpack.c.l.b16 %v68
    %v135 = vpack.c.b16 %v112, %v111
    %v136 = vpack.c.b16 %v114, %v113
    %v137 = vpack.c.b16 %v116, %v115
    %v138 = vpack.c.b16 %v118, %v117
    %v139 = vpack.c.b16 %v120, %v119
    %v140 = vpack.c.b16 %v122, %v121
    %v141 = vpack.c.b16 %v124, %v123
    %v142 = vpack.c.b16 %v126, %v125
    %v143 = vpack.c.b16 %v128, %v127
    %v144 = vpack.c.b16 %v130, %v129
    %v145 = vpack.c.b16 %v132, %v131
    %v146 = vpack.c.b16 %v134, %v133
    %vm159 = vcmask 523264
    %v161 = vsel %vm159, %v82, 0
    %v164 = vsel %vm159, %v84, 0
    %166 = vmatprep.subr.bf16.mxu0 0
    %167 = vmatpush1.bf16.msra.mxu0 %v142
    %168 = vmatprep.subr.bf16.mxu0 0
    %169 = vmatpush1.bf16.msra.mxu0 %v141
    %170 = vmatprep.subr.bf16.mxu0 0
    %171 = vmatpush1.bf16.msra.mxu0 %v140
    %172 = vmatprep.subr.bf16.mxu0 0
    %173 = vmatpush1.bf16.msra.mxu0 %v139
    %174 = vmatprep.subr.bf16.mxu0 0
    %175 = vmatpush1.bf16.msra.mxu0 %v138
    %176 = vmatprep.subr.bf16.mxu0 0
    %177 = vmatpush1.bf16.msra.mxu0 %v137
    %178 = vmatprep.subr.bf16.mxu0 0
    %179 = vmatpush1.bf16.msra.mxu0 %v136
    %180 = vmatprep.subr.bf16.mxu0 0
    %181 = vmatpush1.bf16.msra.mxu0 %v135
    %182 = vmatprep.subr.bf16.mxu0 0
    %183 = vmatpush2.bf16.msra.mxu0 0
    %184 = vmatprep.subr.bf16.mxu0 0
    %185 = vmatpush2.bf16.msra.mxu0 0
    %186 = vmatprep.subr.bf16.mxu0 0
    %187 = vmatpush2.bf16.msra.mxu0 0
    %188 = vmatprep.subr.bf16.mxu0 0
    %189 = vmatpush2.bf16.msra.mxu0 0
    %190 = vmatprep.subr.bf16.mxu0 0
    %191 = vmatpush2.bf16.msra.mxu0 %v146
    %192 = vmatprep.subr.bf16.mxu0 0
    %193 = vmatpush2.bf16.msra.mxu0 %v145
    %194 = vmatprep.subr.bf16.mxu0 0
    %195 = vmatpush2.bf16.msra.mxu0 %v144
    %196 = vmatprep.subr.bf16.mxu0 0
    %197 = vmatpush2.bf16.msra.mxu0 %v143
    %198 = vmatprep.mubr.bf16.mxu0 %v161
    %199 = vmatmul.mubr.bf16.gmra.mxu0 %v81
    %v200 = vpop.f32.mrf.mxu0
    %v201 = vadd.f32 0.0, %v200
    %v202 = vpop.f32.mrf.mxu0
    %v203 = vpop.f32.mrf.mxu0
    %v204 = vadd.f32 0.0, %v203
    %v205 = vpop.f32.mrf.mxu0
    %206 = vmatprep.mubr.bf16.mxu0 %v164
    %207 = vmatmul.mubr.bf16.gmra.mxu0 %v83
    %v208 = vpop.f32.mrf.mxu0
    %v209 = vadd.f32 0.0, %v208
    %v210 = vpop.f32.mrf.mxu0
    %v211 = vpop.f32.mrf.mxu0
    %v212 = vadd.f32 0.0, %v211
    %v213 = vpop.f32.mrf.mxu0
    %214 = vdwg.mxu0
    %215 = vst [vmem:[#allocation7] sm:$0xff] %v201
    %216 = vst [vmem:[#allocation7 + $0x8] sm:$0xff] %v204
    %217 = vst [vmem:[#allocation7 + $0x10] sm:$0xff] %v209
    %218 = vst [vmem:[#allocation7 + $0x18] sm:$0xff] %v212
    // Predicated region
    $region18: #{tpu_custom_call.1} parent=1 // pred_check
      _
    $region19: #{tpu_custom_call.1} parent=1 // pred_check_branch
      %220 = sbr.rel (0) target = $region21
    $region20: #{tpu_custom_call.1} parent=1 // pred_region
      %s222 = ssub.s32 512, 512
      %223 = vsyncadd [#allocation4], %s222
      %s224 = sshll.u32 [#allocation7], 4
      %s225 = int_to_ptr.vmem [resolvable:$true] %s224
      %230 = dma.vmem_to_hbm [thread:$0]  %s225, 512, %s2, [#allocation4], 128, 128, 8
    $region21: #{tpu_custom_call.1} parent=1 // pred_fallthru
      _
    // Predicated region
    $region22: #{tpu_custom_call.1} parent=1 // pred_check
      _
    $region23: #{tpu_custom_call.1} parent=1 // pred_check_branch
      %232 = sbr.rel (0) target = $region25
    $region24: #{tpu_custom_call.1} parent=1 // pred_region
      %233 = dma.done [#allocation4], 512
    $region25: #{tpu_custom_call.1} parent=1 // pred_fallthru
      _
    %234 = vsyncpa [#allocation3], 1
    %235 = vsyncpa [#allocation6], 1
    %236 = vsyncpa [#allocation4], 1

</llo_original>
